<compile_context>
chip_gen: v7x
topology: tpu7x:2x2x1
jax: 0.10.0
libtpu: 0.0.40
codegen_flags: <defaults>
</compile_context>

<pallas_src>
import jax
import jax.numpy as jnp
from jax.experimental import pallas as pl
from jax.experimental.pallas import tpu as pltpu

_LANES = 128
_SUBLANES = 8
_MAX_TILE_ROWS = 2048      # 2048 * 128 * 4 B = 1 MiB per f32 input block
_MIN_TILES_FOR_SPLIT = 8   # only shard across cores when there is real work


def _kld_kernel(mean_ref, logvar_ref, out_ref, acc_ref):
    # Grid = (slice, tile-within-slice); axis 1 is the sequential accumulation
    # axis, axis 0 is "parallel" (megacore shardable). acc_ref is an (8,128)
    # f32 VMEM accumulator that lives across the inner axis.
    step = pl.program_id(1)

    @pl.when(step == 0)
    def _init():
        acc_ref[...] = jnp.zeros_like(acc_ref)

    m = mean_ref[...].astype(jnp.float32)
    lv = logvar_ref[...].astype(jnp.float32)
    term = 1.0 + lv - m * m - jnp.exp(lv)
    # Reduce the (tile_rows, 128) tile down to one (8, 128) vreg:
    # pure VPU adds over the leading axis, no XLU work in the hot loop.
    acc_ref[...] += jnp.sum(term.reshape(-1, _SUBLANES, _LANES), axis=0)

    @pl.when(step == pl.num_programs(1) - 1)
    def _finalize():
        # One cross-lane/sublane reduction per slice; the -0.5 scale is
        # applied once in the wrapper.
        out_ref[0, 0] = jnp.sum(acc_ref[...])


def kld_pallas(mean, log_var):
    """Computes -0.5 * sum(1 + log_var - mean**2 - exp(log_var)) on TPU."""
    assert mean.shape == log_var.shape, "mean/log_var must have the same shape"

    m_flat = jnp.ravel(mean)
    lv_flat = jnp.ravel(log_var)
    n = m_flat.shape[0]

    # Row count of the lane-dense 2D view, rounded up to a sublane multiple.
    rows = pl.cdiv(max(n, 1), _LANES)
    rows = ((rows + _SUBLANES - 1) // _SUBLANES) * _SUBLANES

    if rows <= _MAX_TILE_ROWS:
        # Small input: a single full-array block, grid (1, 1).
        tile_rows = rows
        num_slices = 1
        tiles_per_slice = 1
    else:
        tile_rows = _MAX_TILE_ROWS
        total_tiles = pl.cdiv(rows, tile_rows)
        num_slices = 2 if total_tiles >= _MIN_TILES_FOR_SPLIT else 1
        tiles_per_slice = pl.cdiv(total_tiles, num_slices)

    rows_padded = num_slices * tiles_per_slice * tile_rows
    n_padded = rows_padded * _LANES
    pad = n_padded - n
    if pad:
        # Zero padding (mean=0, log_var=0) contributes exactly 0 to the sum.
        m_flat = jnp.pad(m_flat, (0, pad))
        lv_flat = jnp.pad(lv_flat, (0, pad))

    m2d = m_flat.reshape(rows_padded, _LANES)
    lv2d = lv_flat.reshape(rows_padded, _LANES)

    grid = (num_slices, tiles_per_slice)

    def in_map(c, i):
        return (c * tiles_per_slice + i, 0)

    partials = pl.pallas_call(
        _kld_kernel,
        out_shape=jax.ShapeDtypeStruct((num_slices, 1), jnp.float32),
        grid_spec=pltpu.PrefetchScalarGridSpec(
            num_scalar_prefetch=0,
            grid=grid,
            in_specs=[
                pl.BlockSpec((tile_rows, _LANES), in_map),
                pl.BlockSpec((tile_rows, _LANES), in_map),
            ],
            out_specs=pl.BlockSpec(
                (1, 1), lambda c, i: (c, 0), memory_space=pltpu.SMEM
            ),
            scratch_shapes=[pltpu.VMEM((_SUBLANES, _LANES), jnp.float32)],
        ),
        compiler_params=pltpu.CompilerParams(
            dimension_semantics=("parallel", "arbitrary"),
        ),
    )(m2d, lv2d)

    # Combine per-slice partial sums and apply the -0.5 scale once.
    return -0.5 * jnp.sum(partials)


if __name__ == "__main__":
    key = jax.random.PRNGKey(0)
    k_mean, k_lv = jax.random.split(key)

    # Small VAE-latent-like inputs (NCHW-style), consistent with the module.
    shape = (2, 4, 16, 16)
    mean = jax.random.normal(k_mean, shape, dtype=jnp.float32)
    log_var = 0.1 * jax.random.normal(k_lv, shape, dtype=jnp.float32)

    result = kld_pallas(mean, log_var)
    result = jax.block_until_ready(result)

    # Reference (plain JAX) check of the exact PyTorch forward semantics.
    ref = -0.5 * jnp.sum(1.0 + log_var - mean**2 - jnp.exp(log_var))
    assert jnp.allclose(result, ref, rtol=1e-5, atol=1e-5), (result, ref)

    print("KERNEL_OK")
</pallas_src>

<mosaic_0001>
module attributes {stable_mosaic.version = 11 : i64} {
  func.func @_kld_kernel(%arg0: i32, %arg1: i32, %arg2: memref<16x128xf32, #tpu.memory_space<vmem>>, %arg3: memref<16x128xf32, #tpu.memory_space<vmem>>, %arg4: memref<1x1xf32, #tpu.memory_space<smem>>, %arg5: memref<8x128xf32, #tpu.memory_space<vmem>>) attributes {dimension_semantics = [#tpu.dimension_semantics<parallel>, #tpu.dimension_semantics<arbitrary>], iteration_bounds = array<i64: 1, 1>, scalar_prefetch = 0 : i64, scratch_operands = 1 : i64, tpu.core_type = #tpu.core_type<tc>, window_params = [{transform_indices = @transform_0, window_bounds = array<i64: 16, 128>}, {transform_indices = @transform_1, window_bounds = array<i64: 16, 128>}, {transform_indices = @transform_2, window_bounds = array<i64: 1, 1>}]} {
    %c0_i32 = arith.constant 0 : i32
    %0 = arith.cmpi eq, %arg1, %c0_i32 : i32
    %1 = arith.extui %0 : i1 to i32
    %c0_i32_0 = arith.constant 0 : i32
    %2 = arith.cmpi ne, %1, %c0_i32_0 : i32
    scf.if %2 {
      %cst_11 = arith.constant 0.000000e+00 : f32
      %19 = vector.broadcast %cst_11 : f32 to vector<8x128xf32>
      %c0_12 = arith.constant 0 : index
      %c0_13 = arith.constant 0 : index
      %20 = vector.load %arg5[%c0_12, %c0_13] : memref<8x128xf32, #tpu.memory_space<vmem>>, vector<8x128xf32>
      tpu.vector_store %arg5[%c0_12, %c0_13], %19 {strides = array<i32>} : memref<8x128xf32, #tpu.memory_space<vmem>>, vector<8x128xf32>,
    } else {
    }
    %c0 = arith.constant 0 : index
    %c0_1 = arith.constant 0 : index
    %3 = vector.load %arg2[%c0, %c0_1] : memref<16x128xf32, #tpu.memory_space<vmem>>, vector<16x128xf32>
    %c0_2 = arith.constant 0 : index
    %c0_3 = arith.constant 0 : index
    %4 = vector.load %arg3[%c0_2, %c0_3] : memref<16x128xf32, #tpu.memory_space<vmem>>, vector<16x128xf32>
    %cst = arith.constant 1.000000e+00 : f32
    %5 = vector.broadcast %cst : f32 to vector<16x128xf32>
    %6 = arith.addf %5, %4 : vector<16x128xf32>
    %7 = arith.mulf %3, %3 : vector<16x128xf32>
    %8 = arith.subf %6, %7 : vector<16x128xf32>
    %9 = math.exp %4 : vector<16x128xf32>
    %10 = arith.subf %8, %9 : vector<16x128xf32>
    %c0_4 = arith.constant 0 : index
    %c0_5 = arith.constant 0 : index
    %11 = vector.load %arg5[%c0_4, %c0_5] : memref<8x128xf32, #tpu.memory_space<vmem>>, vector<8x128xf32>
    %12 = vector.shape_cast %10 : vector<16x128xf32> to vector<2x8x128xf32>
    %cst_6 = arith.constant dense<0.000000e+00> : vector<8x128xf32>
    %13 = vector.multi_reduction <add>, %12, %cst_6 [0] : vector<2x8x128xf32> to vector<8x128xf32>
    %14 = arith.addf %11, %13 : vector<8x128xf32>
    %c0_7 = arith.constant 0 : index
    %c0_8 = arith.constant 0 : index
    %15 = vector.load %arg5[%c0_7, %c0_8] : memref<8x128xf32, #tpu.memory_space<vmem>>, vector<8x128xf32>
    tpu.vector_store %arg5[%c0_7, %c0_8], %14 {strides = array<i32>} : memref<8x128xf32, #tpu.memory_space<vmem>>, vector<8x128xf32>,
    %c0_i32_9 = arith.constant 0 : i32
    %16 = arith.cmpi eq, %arg1, %c0_i32_9 : i32
    %17 = arith.extui %16 : i1 to i32
    %c0_i32_10 = arith.constant 0 : i32
    %18 = arith.cmpi ne, %17, %c0_i32_10 : i32
    scf.if %18 {
      %c0_11 = arith.constant 0 : index
      %c0_12 = arith.constant 0 : index
      %19 = vector.load %arg5[%c0_11, %c0_12] : memref<8x128xf32, #tpu.memory_space<vmem>>, vector<8x128xf32>
      %20 = vector.shape_cast %19 : vector<8x128xf32> to vector<1x8x128xf32>
      %cst_13 = arith.constant dense<0.000000e+00> : vector<1xf32>
      %21 = vector.multi_reduction <add>, %20, %cst_13 [1, 2] : vector<1x8x128xf32> to vector<1xf32>
      %22 = vector.shape_cast %21 : vector<1xf32> to vector<1x1x1xf32>
      %23 = vector.extract %22[0, 0, 0] : f32 from vector<1x1x1xf32>
      %c0_14 = arith.constant 0 : index
      %c0_15 = arith.constant 0 : index
      %24 = memref.load %arg4[%c0_14, %c0_15] : memref<1x1xf32, #tpu.memory_space<smem>>
      memref.store %23, %arg4[%c0_14, %c0_15] : memref<1x1xf32, #tpu.memory_space<smem>>
    } else {
    }
    return
  }
  func.func @transform_0(%arg0: i32, %arg1: i32) -> (i32, i32) {
    %c1_i32 = arith.constant 1 : i32
    %0 = arith.muli %arg0, %c1_i32 : i32
    %1 = arith.addi %0, %arg1 : i32
    %c0_i32 = arith.constant 0 : i32
    %c0_i32_0 = arith.constant 0 : i32
    return %1, %c0_i32 : i32, i32
  }
  func.func @transform_1(%arg0: i32, %arg1: i32) -> (i32, i32) {
    %c1_i32 = arith.constant 1 : i32
    %0 = arith.muli %arg0, %c1_i32 : i32
    %1 = arith.addi %0, %arg1 : i32
    %c0_i32 = arith.constant 0 : i32
    %c0_i32_0 = arith.constant 0 : i32
    return %1, %c0_i32 : i32, i32
  }
  func.func @transform_2(%arg0: i32, %arg1: i32) -> (i32, i32) {
    %c0_i32 = arith.constant 0 : i32
    %c0_i32_0 = arith.constant 0 : i32
    return %arg0, %c0_i32 : i32, i32
  }
}

</mosaic_0001>

<llo_original>
// kernel: tpu_custom_call.1
$region0: #{tpu_custom_call.1}
  #allocation0 [shape = 'u32[]', space=smem, size = 0x4, offset = 0x4, fixed_abs, tag = 'smem constant byte address 0x4 - core index']
  #allocation1 [shape = 'u32[144,128]{1,0:T(1,128)}', space=vmem, size = 0x12000, scoped, tag = 'internal scratch']
  #allocation2 [shape = 'f32[8,128]{1,0:T(8,128)}', space=vmem, size = 0x1000, scoped, tag = 'scratch operand']
  %s0 = inlined_call_operand.hbm [shape: f32[16,128], index: 0, kind: input, shape index: {}]
  %s1 = inlined_call_operand.hbm [shape: f32[16,128], index: 1, kind: input, shape index: {}]
  %s2 = inlined_call_operand.hbm [shape: f32[1,1], index: 2, kind: output, shape index: {}]
  %s3 = sld [smem:[#allocation0]]
  $region34: #{tpu_custom_call.1} parent=0
    _
  %s5 = ssub.s32 1, %s3
  %s6 = scalar_select 0, %s5, %s3
  $region1: #{tpu_custom_call.1} parent=0
    #allocation3 [shape = 'u8[8192]{0}', space=vmem, size = 0x2000, scoped, tag = 'input window, operand 0, single buffered']
    #allocation4 [shape = 's32[1]{0}', space=sflag, size = 0x4, scoped, tag = 'scoped memory for tpu_custom_call.1']
    #allocation5 [shape = 's32[1]{0}', space=sflag, size = 0x4, scoped, tag = 'scoped memory for tpu_custom_call.1']
    #allocation6 [shape = 'u8[8192]{0}', space=vmem, size = 0x2000, scoped, tag = 'input window, operand 1, single buffered']
    #allocation7 [shape = 's32[1]{0}', space=sflag, size = 0x4, scoped, tag = 'scoped memory for tpu_custom_call.1']
    #allocation8 [shape = 'u8[512]{0}', space=smem, size = 0x200, scoped, tag = 'output window, operand 0, single buffered']
    %7 = vsyncpa [#allocation4], 0
    %8 = vsyncpa [#allocation7], 0
    %9 = vsyncpa [#allocation5], 0
    // Predicated region
    $region2: #{tpu_custom_call.1} parent=1 // pred_check
      _
    $region3: #{tpu_custom_call.1} parent=1 // pred_check_branch
      %11 = sbr.rel (0) target = $region5
    $region4: #{tpu_custom_call.1} parent=1 // pred_region
      %s12 = sadd.s32 0, 0
      %s13 = smul.u32 2, %s12
      %s15 = ssub.s32 256, 256
      %16 = vsyncadd [#allocation4], %s15
      %s17 = smul.addr %s13, 128
      %s18 = scalar_lea.hbm %s0, %s17
      %s19 = sshll.u32 [#allocation3], 4
      %s20 = int_to_ptr.vmem [resolvable:$true] %s19
      %25 = dma.hbm_to_vmem [thread:$0]  %s18, 256, %s20, [#allocation4], 128, 128, 8
    $region5: #{tpu_custom_call.1} parent=1 // pred_fallthru
      _
    // Predicated region
    $region6: #{tpu_custom_call.1} parent=1 // pred_check
      _
    $region7: #{tpu_custom_call.1} parent=1 // pred_check_branch
      %27 = sbr.rel (0) target = $region9
    $region8: #{tpu_custom_call.1} parent=1 // pred_region
      %s28 = sadd.s32 0, 0
      %s29 = smul.u32 2, %s28
      %s31 = ssub.s32 256, 256
      %32 = vsyncadd [#allocation7], %s31
      %s33 = smul.addr %s29, 128
      %s34 = scalar_lea.hbm %s1, %s33
      %s35 = sshll.u32 [#allocation6], 4
      %s36 = int_to_ptr.vmem [resolvable:$true] %s35
      %41 = dma.hbm_to_vmem [thread:$0]  %s34, 256, %s36, [#allocation7], 128, 128, 8
    $region9: #{tpu_custom_call.1} parent=1 // pred_fallthru
      _
    // Predicated region
    $region10: #{tpu_custom_call.1} parent=1 // pred_check
      _
    $region11: #{tpu_custom_call.1} parent=1 // pred_check_branch
      %43 = sbr.rel (0) target = $region13
    $region12: #{tpu_custom_call.1} parent=1 // pred_region
      %44 = dma.done [#allocation4], 256
    $region13: #{tpu_custom_call.1} parent=1 // pred_fallthru
      _
    // Predicated region
    $region14: #{tpu_custom_call.1} parent=1 // pred_check
      _
    $region15: #{tpu_custom_call.1} parent=1 // pred_check_branch
      %46 = sbr.rel (0) target = $region17
    $region16: #{tpu_custom_call.1} parent=1 // pred_region
      %47 = dma.done [#allocation7], 256
    $region17: #{tpu_custom_call.1} parent=1 // pred_fallthru
      _
    %s48 = sadd.s32 0, 0
    %s49 = smul.u32 2, %s48
    %s50 = sadd.s32 0, 0
    %s51 = smul.u32 2, %s50
    %p52 = scmp.eq.s32.totalorder 0, 0
    // Predicated region
    $region18: #{tpu_custom_call.1} parent=1 // pred_check
      %p53 = pneg %p52
    $region19: #{tpu_custom_call.1} parent=1 // pred_check_branch
      %55 = sbr.rel (%p53) target = $region21
    $region20: #{tpu_custom_call.1} parent=1 // pred_region
      %56 = vst [vmem:[#allocation2] sm:$0xff] 0.0
    $region21: #{tpu_custom_call.1} parent=1 // pred_fallthru
      _
    %v57 = vld [vmem:[#allocation3] sm:$0xff]
    %v58 = vld [vmem:[#allocation3 + $0x8] sm:$0xff]
    %v59 = vld [vmem:[#allocation6] sm:$0xff]
    %v60 = vld [vmem:[#allocation6 + $0x8] sm:$0xff]
    %v61 = vadd.f32 %v59, 1.0
    %v62 = vadd.f32 %v60, 1.0
    %v63 = vmul.f32 %v57, %v57
    %v64 = vmul.f32 %v58, %v58
    %v65 = vsub.f32 %v61, %v63
    %v66 = vsub.f32 %v62, %v64
    %v67 = vmul.f32 %v59, 1.442695
    %v68 = vpow.pop %v67
    %v69 = vmul.f32 %v60, 1.442695
    %v70 = vpow.pop %v69
    %v71 = vsub.f32 %v65, %v68
    %v72 = vsub.f32 %v66, %v70
    %v73 = vld [vmem:[#allocation2] sm:$0xff]
    %v74 = vadd.f32 %v71, %v72
    %v75 = vadd.f32 %v73, %v74
    %76 = vst [vmem:[#allocation2] sm:$0xff] %v75
    // Predicated region
    $region22: #{tpu_custom_call.1} parent=1 // pred_check
      %p77 = pneg %p52
    $region23: #{tpu_custom_call.1} parent=1 // pred_check_branch
      %79 = sbr.rel (%p77) target = $region25
    $region24: #{tpu_custom_call.1} parent=1 // pred_region
      %v80 = vld [vmem:[#allocation2] sm:$0xff]
      %81 = vadd.xlane.f32.xlu0 %v80
      %v82 = vpop.xlane.xlu0 %81
      %v83 = vrot.slane %v82, 4
      %v84 = vadd.f32 %v82, %v83
      %v85 = vrot.slane %v84, 2
      %v86 = vadd.f32 %v84, %v85
      %v87 = vrot.slane %v86, 1
      %v88 = vadd.f32 %v86, %v87
      %s89 = vtos %v88
      %s90 = scalar_lea.smem [#allocation8], 0
      %91 = sst [smem:[%s90]] %s89
    $region25: #{tpu_custom_call.1} parent=1 // pred_fallthru
      _
    // Predicated region
    $region26: #{tpu_custom_call.1} parent=1 // pred_check
      _
    $region27: #{tpu_custom_call.1} parent=1 // pred_check_branch
      %93 = sbr.rel (0) target = $region29
    $region28: #{tpu_custom_call.1} parent=1 // pred_region
      %s95 = ssub.s32 16, 16
      %96 = vsyncadd [#allocation5], %s95
      %99 = dma.smem_to_hbm [#allocation8], 16, %s2, [#allocation5]
    $region29: #{tpu_custom_call.1} parent=1 // pred_fallthru
      _
    // Predicated region
    $region30: #{tpu_custom_call.1} parent=1 // pred_check
      _
    $region31: #{tpu_custom_call.1} parent=1 // pred_check_branch
      %101 = sbr.rel (0) target = $region33
    $region32: #{tpu_custom_call.1} parent=1 // pred_region
      %102 = dma.done [#allocation5], 16
    $region33: #{tpu_custom_call.1} parent=1 // pred_fallthru
      _
    %103 = sfence
    %104 = vsyncpa [#allocation4], 1
    %105 = vsyncpa [#allocation7], 1
    %106 = vsyncpa [#allocation5], 1

</llo_original>
